<compile_context>
chip_gen: v5e
topology: v5e:2x2
jax: 0.10.0
libtpu: 0.0.40
codegen_flags: <defaults>
</compile_context>

<pallas_src>
import jax
import jax.numpy as jnp
from jax import lax
from jax.experimental import pallas as pl
from jax.experimental.pallas import tpu as pltpu

HIDDEN = 64
INPUT = 1


def _rnn_kernel(x_ref, wih_ref, whh_ref, b_ref, wfc_ref, bfc_ref,
                out_ref, pre_ref):
    """One batch tile: full recurrence with h carried in vregs.

    x_ref   : (T, bb)    time-major inputs (trailing size-1 dim dropped)
    wih_ref : (1, H)     row view of W_ih^T
    whh_ref : (H, H)     W_hh^T
    b_ref   : (1, H)     b_ih + b_hh
    wfc_ref : (1, H)     row view of W_fc
    bfc_ref : (1, 1)     FC bias scalar (SMEM)
    out_ref : (bb, 1)
    pre_ref : (T, bb, H) VMEM scratch: precomputed input projections
    """
    T, bb = x_ref.shape
    H = whh_ref.shape[0]

    whh = whh_ref[...]                                   # (H, H), stays in vregs

    # ---- Off the serial chain: input projection for every timestep at once.
    #      pre[t, b, :] = x[t, b] * w_ih_row + (b_ih + b_hh)
    x_tb = x_ref[...]                                    # (T, bb)
    wih3 = wih_ref[...].reshape(1, 1, H)                 # (1, 1, H)
    b3 = b_ref[...].reshape(1, 1, H)                     # (1, 1, H)
    pre_ref[...] = x_tb[:, :, None] * wih3 + b3          # (T, bb, H)

    # ---- Serial recurrence: per step only  load pre[t] -> dot -> add -> tanh.
    # TODO(synk): hold W_hh resident in MXU weight regs across steps
    # (pltpu.matmul_push_rhs / matmul_acc_lhs / matmul_pop) to drop the
    # per-step RHS push; jnp.dot kept for portability across v5e/v6e/v7x.
    h0 = jnp.zeros((bb, H), jnp.float32)

    def step(t, h):
        return jnp.tanh(pre_ref[t]
                        + jnp.dot(h, whh, preferred_element_type=jnp.float32))

    if T <= 32:
        # Small T: full unroll with static indices (chain latency identical).
        h = h0
        for t in range(T):
            h = step(t, h)
    else:
        # Large T: keep instruction count / vreg pressure flat.
        h = lax.fori_loop(0, T, step, h0, unroll=8)

    # ---- Final FC on last hidden state: lane reduce instead of N=1 matmul.
    wfc_b = jnp.broadcast_to(wfc_ref[...], (bb, H))      # hoisted broadcast
    y = jnp.sum(h * wfc_b, axis=-1, keepdims=True) + bfc_ref[0, 0]
    out_ref[...] = y.astype(out_ref.dtype)


def rnn_net_forward(x, params):
    """x: (B, T, 1) float32 (batch-first, like PyTorch). Returns (B, 1)."""
    B, T, I = x.shape
    assert I == INPUT
    H = HIDDEN

    # Time-major (T, B); trailing size-1 input dim dropped.  (Tiny XLA
    # transpose on a few KiB, off the kernel's critical path.)
    x_tb = x.reshape(B, T).T

    # One-time tiny weight re-layouts (pure-JAX glue on a few KiB):
    wih_row = params["w_ih"].reshape(1, H)                 # (64,1) -> (1,64)
    whh_t = params["w_hh"].T                               # (H, H) = W_hh^T
    b = (params["b_ih"] + params["b_hh"]).reshape(1, H)    # (1, H)
    wfc = params["w_fc"].reshape(1, H)                     # (1, H)
    bfc = params["b_fc"].reshape(1, 1)                     # (1, 1) -> SMEM

    # Batch tiling: single resident tile at small B; 128-wide batch blocks at
    # production B so the "parallel" axis shards across v7x's two TensorCores
    # and BlockSpec double-buffering hides the x DMA.
    if B >= 256 and B % 128 == 0:
        bb = 128
    else:
        bb = B
    grid = (B // bb,)

    # TODO(synk): for very long T, add an outer 'arbitrary' time-chunk grid
    # axis streaming x (h carried in VMEM scratch across chunks); size chunks
    # for v7x's 64 MiB VMEM, not v5e/v6e's 128 MiB.
    # TODO(synk): large-B throughput mode: lane-pack two H=64 hidden states
    # per vreg with a block-diagonal 128x128 W_hh to fill the lane dim.
    return pl.pallas_call(
        _rnn_kernel,
        out_shape=jax.ShapeDtypeStruct((B, 1), jnp.float32),
        grid=grid,
        in_specs=[
            pl.BlockSpec((T, bb), lambda i: (0, i)),            # x (time-major)
            pl.BlockSpec((1, H), lambda i: (0, 0)),             # W_ih^T row
            pl.BlockSpec((H, H), lambda i: (0, 0)),             # W_hh^T
            pl.BlockSpec((1, H), lambda i: (0, 0)),             # b_ih + b_hh
            pl.BlockSpec((1, H), lambda i: (0, 0)),             # W_fc row
            pl.BlockSpec(memory_space=pltpu.MemorySpace.SMEM),  # b_fc scalar
        ],
        out_specs=pl.BlockSpec((bb, 1), lambda i: (i, 0)),
        scratch_shapes=[pltpu.VMEM((T, bb, H), jnp.float32)],
        compiler_params=pltpu.CompilerParams(
            dimension_semantics=("parallel",)),
    )(x_tb, wih_row, whh_t, b, wfc, bfc)


def init_params(key):
    """Deterministic init mimicking PyTorch's U(-1/sqrt(H), 1/sqrt(H))."""
    ks = jax.random.split(key, 6)
    stdv = 1.0 / jnp.sqrt(jnp.float32(HIDDEN))
    u = lambda k, shape: jax.random.uniform(
        k, shape, jnp.float32, minval=-stdv, maxval=stdv)
    return {
        "w_ih": u(ks[0], (HIDDEN, INPUT)),   # nn.RNN weight_ih_l0
        "w_hh": u(ks[1], (HIDDEN, HIDDEN)),  # nn.RNN weight_hh_l0
        "b_ih": u(ks[2], (HIDDEN,)),
        "b_hh": u(ks[3], (HIDDEN,)),
        "w_fc": u(ks[4], (1, HIDDEN)),       # nn.Linear(64, 1) weight
        "b_fc": u(ks[5], (1,)),
    }


def reference_forward(x, params):
    """Pure-JAX reference of the same forward pass (sanity check)."""
    B, T, _ = x.shape
    h = jnp.zeros((B, HIDDEN), jnp.float32)
    for t in range(T):
        h = jnp.tanh(x[:, t, :] @ params["w_ih"].T + params["b_ih"]
                     + h @ params["w_hh"].T + params["b_hh"])
    return h @ params["w_fc"].T + params["b_fc"]


if __name__ == "__main__":
    key = jax.random.PRNGKey(0)
    k_x, k_p = jax.random.split(key)

    B, T = 8, 16                       # small batch, small sequence
    x = jax.random.normal(k_x, (B, T, INPUT), jnp.float32)
    params = init_params(k_p)

    y = jax.jit(rnn_net_forward)(x, params)
    y = jax.block_until_ready(y)

    y_ref = reference_forward(x, params)
    assert y.shape == (B, 1)
    # MXU default-precision passes vs the pure-JAX reference path: allow a
    # bf16-level tolerance accumulated over the T-step recurrence.
    assert jnp.allclose(y, y_ref, atol=2e-2, rtol=2e-2), (y, y_ref)

    print("KERNEL_OK")
</pallas_src>

<mosaic_0001>
module attributes {stable_mosaic.version = 11 : i64} {
  func.func @_rnn_kernel(%arg0: i32, %arg1: memref<16x8xf32, #tpu.memory_space<vmem>>, %arg2: memref<1x64xf32, #tpu.memory_space<vmem>>, %arg3: memref<64x64xf32, #tpu.memory_space<vmem>>, %arg4: memref<1x64xf32, #tpu.memory_space<vmem>>, %arg5: memref<1x64xf32, #tpu.memory_space<vmem>>, %arg6: memref<1x1xf32, #tpu.memory_space<smem>>, %arg7: memref<8x1xf32, #tpu.memory_space<vmem>>, %arg8: memref<16x8x64xf32, #tpu.memory_space<vmem>>) attributes {dimension_semantics = [#tpu.dimension_semantics<parallel>], iteration_bounds = array<i64: 1>, scalar_prefetch = 0 : i64, scratch_operands = 1 : i64, tpu.core_type = #tpu.core_type<tc>, window_params = [{transform_indices = @transform_0, window_bounds = array<i64: 16, 8>}, {pipeline_mode = #tpu.pipeline_mode<synchronous>, transform_indices = @transform_1, window_bounds = array<i64: 1, 64>}, {pipeline_mode = #tpu.pipeline_mode<synchronous>, transform_indices = @transform_2, window_bounds = array<i64: 64, 64>}, {pipeline_mode = #tpu.pipeline_mode<synchronous>, transform_indices = @transform_3, window_bounds = array<i64: 1, 64>}, {pipeline_mode = #tpu.pipeline_mode<synchronous>, transform_indices = @transform_4, window_bounds = array<i64: 1, 64>}, {transform_indices = @transform_5, window_bounds = array<i64: 1, 1>}, {transform_indices = @transform_6, window_bounds = array<i64: 8, 1>}]} {
    %c0 = arith.constant 0 : index
    %c0_0 = arith.constant 0 : index
    %0 = vector.load %arg3[%c0, %c0_0] : memref<64x64xf32, #tpu.memory_space<vmem>>, vector<64x64xf32>
    %c0_1 = arith.constant 0 : index
    %c0_2 = arith.constant 0 : index
    %1 = vector.load %arg1[%c0_1, %c0_2] : memref<16x8xf32, #tpu.memory_space<vmem>>, vector<16x8xf32>
    %c0_3 = arith.constant 0 : index
    %c0_4 = arith.constant 0 : index
    %2 = vector.load %arg2[%c0_3, %c0_4] : memref<1x64xf32, #tpu.memory_space<vmem>>, vector<1x64xf32>
    %3 = vector.shape_cast %2 : vector<1x64xf32> to vector<1x1x64xf32>
    %c0_5 = arith.constant 0 : index
    %c0_6 = arith.constant 0 : index
    %4 = vector.load %arg4[%c0_5, %c0_6] : memref<1x64xf32, #tpu.memory_space<vmem>>, vector<1x64xf32>
    %5 = vector.shape_cast %4 : vector<1x64xf32> to vector<1x1x64xf32>
    %6 = vector.shape_cast %1 : vector<16x8xf32> to vector<16x8x1xf32>
    %7 = vector.broadcast %6 : vector<16x8x1xf32> to vector<16x8x64xf32>
    %8 = vector.broadcast %3 : vector<1x1x64xf32> to vector<16x8x64xf32>
    %9 = arith.mulf %7, %8 : vector<16x8x64xf32>
    %10 = vector.broadcast %5 : vector<1x1x64xf32> to vector<16x8x64xf32>
    %11 = arith.addf %9, %10 : vector<16x8x64xf32>
    %c0_7 = arith.constant 0 : index
    %c0_8 = arith.constant 0 : index
    %c0_9 = arith.constant 0 : index
    %12 = vector.load %arg8[%c0_7, %c0_8, %c0_9] : memref<16x8x64xf32, #tpu.memory_space<vmem>>, vector<16x8x64xf32>
    tpu.vector_store %arg8[%c0_7, %c0_8, %c0_9], %11 {strides = array<i32>} : memref<16x8x64xf32, #tpu.memory_space<vmem>>, vector<16x8x64xf32>,
    %cst = arith.constant 0.000000e+00 : f32
    %13 = vector.broadcast %cst : f32 to vector<8x64xf32>
    %c0_10 = arith.constant 0 : index
    %c0_11 = arith.constant 0 : index
    %c0_12 = arith.constant 0 : index
    %14 = vector.load %arg8[%c0_10, %c0_11, %c0_12] : memref<16x8x64xf32, #tpu.memory_space<vmem>>, vector<1x8x64xf32>
    %15 = vector.shape_cast %14 : vector<1x8x64xf32> to vector<8x64xf32>
    %cst_13 = arith.constant dense<0.000000e+00> : vector<8x64xf32>
    %16 = tpu.matmul %13, %0, %cst_13 {dimension_numbers = #tpu.dot_dimension_numbers<[1], [0], [0], [1], [0, 0, 1, 1], [], []>} : vector<8x64xf32>, vector<64x64xf32>, vector<8x64xf32> -> vector<8x64xf32>
    %17 = arith.addf %15, %16 : vector<8x64xf32>
    %18 = math.tanh %17 : vector<8x64xf32>
    %c1 = arith.constant 1 : index
    %c0_14 = arith.constant 0 : index
    %c0_15 = arith.constant 0 : index
    %19 = vector.load %arg8[%c1, %c0_14, %c0_15] : memref<16x8x64xf32, #tpu.memory_space<vmem>>, vector<1x8x64xf32>
    %20 = vector.shape_cast %19 : vector<1x8x64xf32> to vector<8x64xf32>
    %cst_16 = arith.constant dense<0.000000e+00> : vector<8x64xf32>
    %21 = tpu.matmul %18, %0, %cst_16 {dimension_numbers = #tpu.dot_dimension_numbers<[1], [0], [0], [1], [0, 0, 1, 1], [], []>} : vector<8x64xf32>, vector<64x64xf32>, vector<8x64xf32> -> vector<8x64xf32>
    %22 = arith.addf %20, %21 : vector<8x64xf32>
    %23 = math.tanh %22 : vector<8x64xf32>
    %c2 = arith.constant 2 : index
    %c0_17 = arith.constant 0 : index
    %c0_18 = arith.constant 0 : index
    %24 = vector.load %arg8[%c2, %c0_17, %c0_18] : memref<16x8x64xf32, #tpu.memory_space<vmem>>, vector<1x8x64xf32>
    %25 = vector.shape_cast %24 : vector<1x8x64xf32> to vector<8x64xf32>
    %cst_19 = arith.constant dense<0.000000e+00> : vector<8x64xf32>
    %26 = tpu.matmul %23, %0, %cst_19 {dimension_numbers = #tpu.dot_dimension_numbers<[1], [0], [0], [1], [0, 0, 1, 1], [], []>} : vector<8x64xf32>, vector<64x64xf32>, vector<8x64xf32> -> vector<8x64xf32>
    %27 = arith.addf %25, %26 : vector<8x64xf32>
    %28 = math.tanh %27 : vector<8x64xf32>
    %c3 = arith.constant 3 : index
    %c0_20 = arith.constant 0 : index
    %c0_21 = arith.constant 0 : index
    %29 = vector.load %arg8[%c3, %c0_20, %c0_21] : memref<16x8x64xf32, #tpu.memory_space<vmem>>, vector<1x8x64xf32>
    %30 = vector.shape_cast %29 : vector<1x8x64xf32> to vector<8x64xf32>
    %cst_22 = arith.constant dense<0.000000e+00> : vector<8x64xf32>
    %31 = tpu.matmul %28, %0, %cst_22 {dimension_numbers = #tpu.dot_dimension_numbers<[1], [0], [0], [1], [0, 0, 1, 1], [], []>} : vector<8x64xf32>, vector<64x64xf32>, vector<8x64xf32> -> vector<8x64xf32>
    %32 = arith.addf %30, %31 : vector<8x64xf32>
    %33 = math.tanh %32 : vector<8x64xf32>
    %c4 = arith.constant 4 : index
    %c0_23 = arith.constant 0 : index
    %c0_24 = arith.constant 0 : index
    %34 = vector.load %arg8[%c4, %c0_23, %c0_24] : memref<16x8x64xf32, #tpu.memory_space<vmem>>, vector<1x8x64xf32>
    %35 = vector.shape_cast %34 : vector<1x8x64xf32> to vector<8x64xf32>
    %cst_25 = arith.constant dense<0.000000e+00> : vector<8x64xf32>
    %36 = tpu.matmul %33, %0, %cst_25 {dimension_numbers = #tpu.dot_dimension_numbers<[1], [0], [0], [1], [0, 0, 1, 1], [], []>} : vector<8x64xf32>, vector<64x64xf32>, vector<8x64xf32> -> vector<8x64xf32>
    %37 = arith.addf %35, %36 : vector<8x64xf32>
    %38 = math.tanh %37 : vector<8x64xf32>
    %c5 = arith.constant 5 : index
    %c0_26 = arith.constant 0 : index
    %c0_27 = arith.constant 0 : index
    %39 = vector.load %arg8[%c5, %c0_26, %c0_27] : memref<16x8x64xf32, #tpu.memory_space<vmem>>, vector<1x8x64xf32>
    %40 = vector.shape_cast %39 : vector<1x8x64xf32> to vector<8x64xf32>
    %cst_28 = arith.constant dense<0.000000e+00> : vector<8x64xf32>
    %41 = tpu.matmul %38, %0, %cst_28 {dimension_numbers = #tpu.dot_dimension_numbers<[1], [0], [0], [1], [0, 0, 1, 1], [], []>} : vector<8x64xf32>, vector<64x64xf32>, vector<8x64xf32> -> vector<8x64xf32>
    %42 = arith.addf %40, %41 : vector<8x64xf32>
    %43 = math.tanh %42 : vector<8x64xf32>
    %c6 = arith.constant 6 : index
    %c0_29 = arith.constant 0 : index
    %c0_30 = arith.constant 0 : index
    %44 = vector.load %arg8[%c6, %c0_29, %c0_30] : memref<16x8x64xf32, #tpu.memory_space<vmem>>, vector<1x8x64xf32>
    %45 = vector.shape_cast %44 : vector<1x8x64xf32> to vector<8x64xf32>
    %cst_31 = arith.constant dense<0.000000e+00> : vector<8x64xf32>
    %46 = tpu.matmul %43, %0, %cst_31 {dimension_numbers = #tpu.dot_dimension_numbers<[1], [0], [0], [1], [0, 0, 1, 1], [], []>} : vector<8x64xf32>, vector<64x64xf32>, vector<8x64xf32> -> vector<8x64xf32>
    %47 = arith.addf %45, %46 : vector<8x64xf32>
    %48 = math.tanh %47 : vector<8x64xf32>
    %c7 = arith.constant 7 : index
    %c0_32 = arith.constant 0 : index
    %c0_33 = arith.constant 0 : index
    %49 = vector.load %arg8[%c7, %c0_32, %c0_33] : memref<16x8x64xf32, #tpu.memory_space<vmem>>, vector<1x8x64xf32>
    %50 = vector.shape_cast %49 : vector<1x8x64xf32> to vector<8x64xf32>
    %cst_34 = arith.constant dense<0.000000e+00> : vector<8x64xf32>
    %51 = tpu.matmul %48, %0, %cst_34 {dimension_numbers = #tpu.dot_dimension_numbers<[1], [0], [0], [1], [0, 0, 1, 1], [], []>} : vector<8x64xf32>, vector<64x64xf32>, vector<8x64xf32> -> vector<8x64xf32>
    %52 = arith.addf %50, %51 : vector<8x64xf32>
    %53 = math.tanh %52 : vector<8x64xf32>
    %c8 = arith.constant 8 : index
    %c0_35 = arith.constant 0 : index
    %c0_36 = arith.constant 0 : index
    %54 = vector.load %arg8[%c8, %c0_35, %c0_36] : memref<16x8x64xf32, #tpu.memory_space<vmem>>, vector<1x8x64xf32>
    %55 = vector.shape_cast %54 : vector<1x8x64xf32> to vector<8x64xf32>
    %cst_37 = arith.constant dense<0.000000e+00> : vector<8x64xf32>
    %56 = tpu.matmul %53, %0, %cst_37 {dimension_numbers = #tpu.dot_dimension_numbers<[1], [0], [0], [1], [0, 0, 1, 1], [], []>} : vector<8x64xf32>, vector<64x64xf32>, vector<8x64xf32> -> vector<8x64xf32>
    %57 = arith.addf %55, %56 : vector<8x64xf32>
    %58 = math.tanh %57 : vector<8x64xf32>
    %c9 = arith.constant 9 : index
    %c0_38 = arith.constant 0 : index
    %c0_39 = arith.constant 0 : index
    %59 = vector.load %arg8[%c9, %c0_38, %c0_39] : memref<16x8x64xf32, #tpu.memory_space<vmem>>, vector<1x8x64xf32>
    %60 = vector.shape_cast %59 : vector<1x8x64xf32> to vector<8x64xf32>
    %cst_40 = arith.constant dense<0.000000e+00> : vector<8x64xf32>
    %61 = tpu.matmul %58, %0, %cst_40 {dimension_numbers = #tpu.dot_dimension_numbers<[1], [0], [0], [1], [0, 0, 1, 1], [], []>} : vector<8x64xf32>, vector<64x64xf32>, vector<8x64xf32> -> vector<8x64xf32>
    %62 = arith.addf %60, %61 : vector<8x64xf32>
    %63 = math.tanh %62 : vector<8x64xf32>
    %c10 = arith.constant 10 : index
    %c0_41 = arith.constant 0 : index
    %c0_42 = arith.constant 0 : index
    %64 = vector.load %arg8[%c10, %c0_41, %c0_42] : memref<16x8x64xf32, #tpu.memory_space<vmem>>, vector<1x8x64xf32>
    %65 = vector.shape_cast %64 : vector<1x8x64xf32> to vector<8x64xf32>
    %cst_43 = arith.constant dense<0.000000e+00> : vector<8x64xf32>
    %66 = tpu.matmul %63, %0, %cst_43 {dimension_numbers = #tpu.dot_dimension_numbers<[1], [0], [0], [1], [0, 0, 1, 1], [], []>} : vector<8x64xf32>, vector<64x64xf32>, vector<8x64xf32> -> vector<8x64xf32>
    %67 = arith.addf %65, %66 : vector<8x64xf32>
    %68 = math.tanh %67 : vector<8x64xf32>
    %c11 = arith.constant 11 : index
    %c0_44 = arith.constant 0 : index
    %c0_45 = arith.constant 0 : index
    %69 = vector.load %arg8[%c11, %c0_44, %c0_45] : memref<16x8x64xf32, #tpu.memory_space<vmem>>, vector<1x8x64xf32>
    %70 = vector.shape_cast %69 : vector<1x8x64xf32> to vector<8x64xf32>
    %cst_46 = arith.constant dense<0.000000e+00> : vector<8x64xf32>
    %71 = tpu.matmul %68, %0, %cst_46 {dimension_numbers = #tpu.dot_dimension_numbers<[1], [0], [0], [1], [0, 0, 1, 1], [], []>} : vector<8x64xf32>, vector<64x64xf32>, vector<8x64xf32> -> vector<8x64xf32>
    %72 = arith.addf %70, %71 : vector<8x64xf32>
    %73 = math.tanh %72 : vector<8x64xf32>
    %c12 = arith.constant 12 : index
    %c0_47 = arith.constant 0 : index
    %c0_48 = arith.constant 0 : index
    %74 = vector.load %arg8[%c12, %c0_47, %c0_48] : memref<16x8x64xf32, #tpu.memory_space<vmem>>, vector<1x8x64xf32>
    %75 = vector.shape_cast %74 : vector<1x8x64xf32> to vector<8x64xf32>
    %cst_49 = arith.constant dense<0.000000e+00> : vector<8x64xf32>
    %76 = tpu.matmul %73, %0, %cst_49 {dimension_numbers = #tpu.dot_dimension_numbers<[1], [0], [0], [1], [0, 0, 1, 1], [], []>} : vector<8x64xf32>, vector<64x64xf32>, vector<8x64xf32> -> vector<8x64xf32>
    %77 = arith.addf %75, %76 : vector<8x64xf32>
    %78 = math.tanh %77 : vector<8x64xf32>
    %c13 = arith.constant 13 : index
    %c0_50 = arith.constant 0 : index
    %c0_51 = arith.constant 0 : index
    %79 = vector.load %arg8[%c13, %c0_50, %c0_51] : memref<16x8x64xf32, #tpu.memory_space<vmem>>, vector<1x8x64xf32>
    %80 = vector.shape_cast %79 : vector<1x8x64xf32> to vector<8x64xf32>
    %cst_52 = arith.constant dense<0.000000e+00> : vector<8x64xf32>
    %81 = tpu.matmul %78, %0, %cst_52 {dimension_numbers = #tpu.dot_dimension_numbers<[1], [0], [0], [1], [0, 0, 1, 1], [], []>} : vector<8x64xf32>, vector<64x64xf32>, vector<8x64xf32> -> vector<8x64xf32>
    %82 = arith.addf %80, %81 : vector<8x64xf32>
    %83 = math.tanh %82 : vector<8x64xf32>
    %c14 = arith.constant 14 : index
    %c0_53 = arith.constant 0 : index
    %c0_54 = arith.constant 0 : index
    %84 = vector.load %arg8[%c14, %c0_53, %c0_54] : memref<16x8x64xf32, #tpu.memory_space<vmem>>, vector<1x8x64xf32>
    %85 = vector.shape_cast %84 : vector<1x8x64xf32> to vector<8x64xf32>
    %cst_55 = arith.constant dense<0.000000e+00> : vector<8x64xf32>
    %86 = tpu.matmul %83, %0, %cst_55 {dimension_numbers = #tpu.dot_dimension_numbers<[1], [0], [0], [1], [0, 0, 1, 1], [], []>} : vector<8x64xf32>, vector<64x64xf32>, vector<8x64xf32> -> vector<8x64xf32>
    %87 = arith.addf %85, %86 : vector<8x64xf32>
    %88 = math.tanh %87 : vector<8x64xf32>
    %c15 = arith.constant 15 : index
    %c0_56 = arith.constant 0 : index
    %c0_57 = arith.constant 0 : index
    %89 = vector.load %arg8[%c15, %c0_56, %c0_57] : memref<16x8x64xf32, #tpu.memory_space<vmem>>, vector<1x8x64xf32>
    %90 = vector.shape_cast %89 : vector<1x8x64xf32> to vector<8x64xf32>
    %cst_58 = arith.constant dense<0.000000e+00> : vector<8x64xf32>
    %91 = tpu.matmul %88, %0, %cst_58 {dimension_numbers = #tpu.dot_dimension_numbers<[1], [0], [0], [1], [0, 0, 1, 1], [], []>} : vector<8x64xf32>, vector<64x64xf32>, vector<8x64xf32> -> vector<8x64xf32>
    %92 = arith.addf %90, %91 : vector<8x64xf32>
    %93 = math.tanh %92 : vector<8x64xf32>
    %c0_59 = arith.constant 0 : index
    %c0_60 = arith.constant 0 : index
    %94 = vector.load %arg5[%c0_59, %c0_60] : memref<1x64xf32, #tpu.memory_space<vmem>>, vector<1x64xf32>
    %95 = vector.shape_cast %94 : vector<1x64xf32> to vector<1x64xf32>
    %96 = vector.broadcast %95 : vector<1x64xf32> to vector<8x64xf32>
    %97 = arith.mulf %93, %96 : vector<8x64xf32>
    %cst_61 = arith.constant dense<0.000000e+00> : vector<8xf32>
    %98 = vector.multi_reduction <add>, %97, %cst_61 [1] : vector<8x64xf32> to vector<8xf32>
    %99 = vector.shape_cast %98 : vector<8xf32> to vector<8x1xf32>
    %c0_62 = arith.constant 0 : index
    %c0_63 = arith.constant 0 : index
    %100 = memref.load %arg6[%c0_62, %c0_63] : memref<1x1xf32, #tpu.memory_space<smem>>
    %101 = vector.broadcast %100 : f32 to vector<8x1xf32>
    %102 = arith.addf %99, %101 : vector<8x1xf32>
    %c0_64 = arith.constant 0 : index
    %c0_65 = arith.constant 0 : index
    %103 = vector.load %arg7[%c0_64, %c0_65] : memref<8x1xf32, #tpu.memory_space<vmem>>, vector<8x1xf32>
    tpu.vector_store %arg7[%c0_64, %c0_65], %102 {strides = array<i32>} : memref<8x1xf32, #tpu.memory_space<vmem>>, vector<8x1xf32>,
    return
  }
  func.func @transform_0(%arg0: i32) -> (i32, i32) {
    %c0_i32 = arith.constant 0 : i32
    %c0_i32_0 = arith.constant 0 : i32
    return %c0_i32, %arg0 : i32, i32
  }
  func.func @transform_1(%arg0: i32) -> (i32, i32) {
    %c0_i32 = arith.constant 0 : i32
    %c0_i32_0 = arith.constant 0 : i32
    %c0_i32_1 = arith.constant 0 : i32
    return %c0_i32, %c0_i32_0 : i32, i32
  }
  func.func @transform_2(%arg0: i32) -> (i32, i32) {
    %c0_i32 = arith.constant 0 : i32
    %c0_i32_0 = arith.constant 0 : i32
    %c0_i32_1 = arith.constant 0 : i32
    return %c0_i32, %c0_i32_0 : i32, i32
  }
  func.func @transform_3(%arg0: i32) -> (i32, i32) {
    %c0_i32 = arith.constant 0 : i32
    %c0_i32_0 = arith.constant 0 : i32
    %c0_i32_1 = arith.constant 0 : i32
    return %c0_i32, %c0_i32_0 : i32, i32
  }
  func.func @transform_4(%arg0: i32) -> (i32, i32) {
    %c0_i32 = arith.constant 0 : i32
    %c0_i32_0 = arith.constant 0 : i32
    %c0_i32_1 = arith.constant 0 : i32
    return %c0_i32, %c0_i32_0 : i32, i32
  }
  func.func @transform_5(%arg0: i32) -> (i32, i32) {
    %c0_i32 = arith.constant 0 : i32
    %c0_i32_0 = arith.constant 0 : i32
    %c0_i32_1 = arith.constant 0 : i32
    return %c0_i32, %c0_i32_0 : i32, i32
  }
  func.func @transform_6(%arg0: i32) -> (i32, i32) {
    %c0_i32 = arith.constant 0 : i32
    %c0_i32_0 = arith.constant 0 : i32
    return %arg0, %c0_i32 : i32, i32
  }
}

</mosaic_0001>

<llo_original>
// kernel: rnn_net_forward.1
$region0: #{rnn_net_forward.1}
  #allocation0 [shape = 'u32[]', space=smem, size = 0x4, offset = 0x4, fixed_abs, tag = 'smem constant byte address 0x4 - core index']
  #allocation1 [shape = 'u32[72,128]{1,0:T(1,128)}', space=vmem, size = 0x9000, scoped, tag = 'internal scratch']
  #allocation2 [shape = 'f32[16,8,64]{2,1,0:T(8,128)}', space=vmem, size = 0x10000, scoped, tag = 'scratch operand']
  #allocation3 [shape = 'f32[1,1]{1,0:T(1,128)S(6)}', space=smem, size = 0x200, scoped, tag = 'scoped memory for rnn_net_forward.1']
  %s0 = inlined_call_operand.vmem [shape: f32[16,8], index: 0, kind: input, shape index: {}]
  %s1 = inlined_call_operand.vmem [shape: f32[1,64], index: 1, kind: input, shape index: {}]
  %s2 = inlined_call_operand.vmem [shape: f32[64,64], index: 2, kind: input, shape index: {}]
  %s3 = inlined_call_operand.vmem [shape: f32[1,64], index: 3, kind: input, shape index: {}]
  %s4 = inlined_call_operand.vmem [shape: f32[1,64], index: 4, kind: input, shape index: {}]
  %s5 = inlined_call_operand.<no memory space> [shape: f32[1,1], index: 5, kind: input, shape index: {}]
  %s6 = inlined_call_operand.vmem [shape: f32[8,1], index: 6, kind: output, shape index: {}]
  %s7 = sld [smem:[#allocation0]]
  $region34: #{rnn_net_forward.1} parent=0
    _
  %s9 = ssub.s32 1, %s7
  %s10 = scalar_select 0, %s9, %s7
  %11 = sst [smem:[#allocation3]] %s5
  // Predicated region
  $region2: #{rnn_net_forward.1} parent=0 // pred_check
    _
  $region3: #{rnn_net_forward.1} parent=0 // pred_check_branch
    %13 = sbr.rel (0) target = $region5
  $region4: #{rnn_net_forward.1} parent=0 // pred_region
    _
  $region5: #{rnn_net_forward.1} parent=0 // pred_fallthru
    _
  // Predicated region
  $region6: #{rnn_net_forward.1} parent=0 // pred_check
    _
  $region7: #{rnn_net_forward.1} parent=0 // pred_check_branch
    %15 = sbr.rel (0) target = $region9
  $region8: #{rnn_net_forward.1} parent=0 // pred_region
    _
  $region9: #{rnn_net_forward.1} parent=0 // pred_fallthru
    _
  // Predicated region
  $region10: #{rnn_net_forward.1} parent=0 // pred_check
    _
  $region11: #{rnn_net_forward.1} parent=0 // pred_check_branch
    %17 = sbr.rel (0) target = $region13
  $region12: #{rnn_net_forward.1} parent=0 // pred_region
    _
  $region13: #{rnn_net_forward.1} parent=0 // pred_fallthru
    _
  // Predicated region
  $region14: #{rnn_net_forward.1} parent=0 // pred_check
    _
  $region15: #{rnn_net_forward.1} parent=0 // pred_check_branch
    %19 = sbr.rel (0) target = $region17
  $region16: #{rnn_net_forward.1} parent=0 // pred_region
    _
  $region17: #{rnn_net_forward.1} parent=0 // pred_fallthru
    _
  // Predicated region
  $region18: #{rnn_net_forward.1} parent=0 // pred_check
    _
  $region19: #{rnn_net_forward.1} parent=0 // pred_check_branch
    %21 = sbr.rel (0) target = $region21
  $region20: #{rnn_net_forward.1} parent=0 // pred_region
    _
  $region21: #{rnn_net_forward.1} parent=0 // pred_fallthru
    _
  // Predicated region
  $region22: #{rnn_net_forward.1} parent=0 // pred_check
    _
  $region23: #{rnn_net_forward.1} parent=0 // pred_check_branch
    %23 = sbr.rel (0) target = $region25
  $region24: #{rnn_net_forward.1} parent=0 // pred_region
    _
  $region25: #{rnn_net_forward.1} parent=0 // pred_fallthru
    _
  %v24 = vld [vmem:[%s2] sm:$0xff]
  %v25 = vld [vmem:[%s2 + $0x8] sm:$0xff]
  %v26 = vld [vmem:[%s2 + $0x10] sm:$0xff]
  %v27 = vld [vmem:[%s2 + $0x18] sm:$0xff]
  %v28 = vld [vmem:[%s2 + $0x20] sm:$0xff]
  %v29 = vld [vmem:[%s2 + $0x28] sm:$0xff]
  %v30 = vld [vmem:[%s2 + $0x30] sm:$0xff]
  %v31 = vld [vmem:[%s2 + $0x38] sm:$0xff]
  %v32 = vld [vmem:[%s0] sm:$0xff]
  %v33 = vld [vmem:[%s0 + $0x8] sm:$0xff]
  %v34 = vld [vmem:[%s1] sm:$0x1]
  %v35 = vld [vmem:[%s3] sm:$0x1]
  %v36 = vperm.slane %v32, 0
  %v37 = vlaneseq
  %v38 = vshrl.u32 %v37, 7
  %40 = vset.pattern.permute.xlu0 %v38
  %41 = vperm.xlu0 %40, %v36
  %v42 = vpop.permute.xlu0 %41
  %v43 = vperm.slane %v32, 1
  %v44 = vlaneseq
  %v45 = vshrl.u32 %v44, 7
  %47 = vset.pattern.permute.xlu0 %v45
  %48 = vperm.xlu0 %47, %v43
  %v49 = vpop.permute.xlu0 %48
  %v50 = vperm.slane %v32, 2
  %v51 = vlaneseq
  %v52 = vshrl.u32 %v51, 7
  %54 = vset.pattern.permute.xlu0 %v52
  %55 = vperm.xlu0 %54, %v50
  %v56 = vpop.permute.xlu0 %55
  %v57 = vperm.slane %v32, 3
  %v58 = vlaneseq
  %v59 = vshrl.u32 %v58, 7
  %61 = vset.pattern.permute.xlu0 %v59
  %62 = vperm.xlu0 %61, %v57
  %v63 = vpop.permute.xlu0 %62
  %v64 = vperm.slane %v32, 4
  %v65 = vlaneseq
  %v66 = vshrl.u32 %v65, 7
  %68 = vset.pattern.permute.xlu0 %v66
  %69 = vperm.xlu0 %68, %v64
  %v70 = vpop.permute.xlu0 %69
  %v71 = vperm.slane %v32, 5
  %v72 = vlaneseq
  %v73 = vshrl.u32 %v72, 7
  %75 = vset.pattern.permute.xlu0 %v73
  %76 = vperm.xlu0 %75, %v71
  %v77 = vpop.permute.xlu0 %76
  %v78 = vperm.slane %v32, 6
  %v79 = vlaneseq
  %v80 = vshrl.u32 %v79, 7
  %82 = vset.pattern.permute.xlu0 %v80
  %83 = vperm.xlu0 %82, %v78
  %v84 = vpop.permute.xlu0 %83
  %v85 = vperm.slane %v32, 7
  %v86 = vlaneseq
  %v87 = vshrl.u32 %v86, 7
  %89 = vset.pattern.permute.xlu0 %v87
  %90 = vperm.xlu0 %89, %v85
  %v91 = vpop.permute.xlu0 %90
  %v92 = vperm.slane %v33, 0
  %v93 = vlaneseq
  %v94 = vshrl.u32 %v93, 7
  %96 = vset.pattern.permute.xlu0 %v94
  %97 = vperm.xlu0 %96, %v92
  %v98 = vpop.permute.xlu0 %97
  %v99 = vperm.slane %v33, 1
  %v100 = vlaneseq
  %v101 = vshrl.u32 %v100, 7
  %103 = vset.pattern.permute.xlu0 %v101
  %104 = vperm.xlu0 %103, %v99
  %v105 = vpop.permute.xlu0 %104
  %v106 = vperm.slane %v33, 2
  %v107 = vlaneseq
  %v108 = vshrl.u32 %v107, 7
  %110 = vset.pattern.permute.xlu0 %v108
  %111 = vperm.xlu0 %110, %v106
  %v112 = vpop.permute.xlu0 %111
  %v113 = vperm.slane %v33, 3
  %v114 = vlaneseq
  %v115 = vshrl.u32 %v114, 7
  %117 = vset.pattern.permute.xlu0 %v115
  %118 = vperm.xlu0 %117, %v113
  %v119 = vpop.permute.xlu0 %118
  %v120 = vperm.slane %v33, 4
  %v121 = vlaneseq
  %v122 = vshrl.u32 %v121, 7
  %124 = vset.pattern.permute.xlu0 %v122
  %125 = vperm.xlu0 %124, %v120
  %v126 = vpop.permute.xlu0 %125
  %v127 = vperm.slane %v33, 5
  %v128 = vlaneseq
  %v129 = vshrl.u32 %v128, 7
  %131 = vset.pattern.permute.xlu0 %v129
  %132 = vperm.xlu0 %131, %v127
  %v133 = vpop.permute.xlu0 %132
  %v134 = vperm.slane %v33, 6
  %v135 = vlaneseq
  %v136 = vshrl.u32 %v135, 7
  %138 = vset.pattern.permute.xlu0 %v136
  %139 = vperm.xlu0 %138, %v134
  %v140 = vpop.permute.xlu0 %139
  %v141 = vperm.slane %v33, 7
  %v142 = vlaneseq
  %v143 = vshrl.u32 %v142, 7
  %145 = vset.pattern.permute.xlu0 %v143
  %146 = vperm.xlu0 %145, %v141
  %v147 = vpop.permute.xlu0 %146
  %v149 = vperm.slane %v34, 0
  %v151 = vmul.f32 %v42, %v149
  %v152 = vmul.f32 %v49, %v149
  %v153 = vmul.f32 %v56, %v149
  %v154 = vmul.f32 %v63, %v149
  %v155 = vmul.f32 %v70, %v149
  %v156 = vmul.f32 %v77, %v149
  %v157 = vmul.f32 %v84, %v149
  %v158 = vmul.f32 %v91, %v149
  %v159 = vmul.f32 %v98, %v149
  %v160 = vmul.f32 %v105, %v149
  %v161 = vmul.f32 %v112, %v149
  %v162 = vmul.f32 %v119, %v149
  %v163 = vmul.f32 %v126, %v149
  %v164 = vmul.f32 %v133, %v149
  %v165 = vmul.f32 %v140, %v149
  %v166 = vmul.f32 %v147, %v149
  %v168 = vperm.slane %v35, 0
  %v170 = vadd.f32 %v151, %v168
  %v171 = vadd.f32 %v152, %v168
  %v172 = vadd.f32 %v153, %v168
  %v173 = vadd.f32 %v154, %v168
  %v174 = vadd.f32 %v155, %v168
  %v175 = vadd.f32 %v156, %v168
  %v176 = vadd.f32 %v157, %v168
  %v177 = vadd.f32 %v158, %v168
  %v178 = vadd.f32 %v159, %v168
  %v179 = vadd.f32 %v160, %v168
  %v180 = vadd.f32 %v161, %v168
  %v181 = vadd.f32 %v162, %v168
  %v182 = vadd.f32 %v163, %v168
  %v183 = vadd.f32 %v164, %v168
  %v184 = vadd.f32 %v165, %v168
  %v185 = vadd.f32 %v166, %v168
  %vm186 = vcmask 523264
  %187 = vst.msk [vmem:[#allocation2] sm:$0xff] %vm186, %v170
  %188 = vst.msk [vmem:[#allocation2 + $0x8] sm:$0xff] %vm186, %v171
  %189 = vst.msk [vmem:[#allocation2 + $0x10] sm:$0xff] %vm186, %v172
  %190 = vst.msk [vmem:[#allocation2 + $0x18] sm:$0xff] %vm186, %v173
  %191 = vst.msk [vmem:[#allocation2 + $0x20] sm:$0xff] %vm186, %v174
  %192 = vst.msk [vmem:[#allocation2 + $0x28] sm:$0xff] %vm186, %v175
  %193 = vst.msk [vmem:[#allocation2 + $0x30] sm:$0xff] %vm186, %v176
  %194 = vst.msk [vmem:[#allocation2 + $0x38] sm:$0xff] %vm186, %v177
  %195 = vst.msk [vmem:[#allocation2 + $0x40] sm:$0xff] %vm186, %v178
  %196 = vst.msk [vmem:[#allocation2 + $0x48] sm:$0xff] %vm186, %v179
  %197 = vst.msk [vmem:[#allocation2 + $0x50] sm:$0xff] %vm186, %v180
  %198 = vst.msk [vmem:[#allocation2 + $0x58] sm:$0xff] %vm186, %v181
  %199 = vst.msk [vmem:[#allocation2 + $0x60] sm:$0xff] %vm186, %v182
  %200 = vst.msk [vmem:[#allocation2 + $0x68] sm:$0xff] %vm186, %v183
  %201 = vst.msk [vmem:[#allocation2 + $0x70] sm:$0xff] %vm186, %v184
  %202 = vst.msk [vmem:[#allocation2 + $0x78] sm:$0xff] %vm186, %v185
  %v203 = vld [vmem:[#allocation2] sm:$0xff]
  %v205 = vsel %vm186, 0.0, 0
  %207 = vmatpush.msra.mxu0 0.0
  %208 = vmatpush.msra.mxu0 0.0
  %209 = vmatpush.msra.mxu0 0.0
  %210 = vmatpush.msra.mxu0 0.0
  %211 = vmatpush.msra.mxu0 0.0
  %212 = vmatpush.msra.mxu0 0.0
  %213 = vmatpush.msra.mxu0 0.0
  %214 = vmatpush.msra.mxu0 0.0
  %215 = vmatpush.msra.mxu0 %v31
  %216 = vmatpush.msra.mxu0 %v30
  %217 = vmatpush.msra.mxu0 %v29
  %218 = vmatpush.msra.mxu0 %v28
  %219 = vmatpush.msra.mxu0 %v27
  %220 = vmatpush.msra.mxu0 %v26
  %221 = vmatpush.msra.mxu0 %v25
  %222 = vmatpush.msra.mxu0 %v24
  %223 = vmatmul.f32.gmra.mxu0 %v205
  %v224 = vpop.f32.mrf.mxu0
  %v225 = vadd.f32 0.0, %v224
  %226 = vdwg.mxu0
  %v227 = vadd.f32 %v203, %v225
  %v228 = vtanh.pop %v227
  %s229 = scalar_lea.vmem [#allocation2], 8
  %v230 = vld [vmem:[%s229] sm:$0xff]
  %v232 = vsel %vm186, %v228, 0
  %234 = vmatpush.msra.mxu0 0.0
  %235 = vmatpush.msra.mxu0 0.0
  %236 = vmatpush.msra.mxu0 0.0
  %237 = vmatpush.msra.mxu0 0.0
  %238 = vmatpush.msra.mxu0 0.0
  %239 = vmatpush.msra.mxu0 0.0
  %240 = vmatpush.msra.mxu0 0.0
  %241 = vmatpush.msra.mxu0 0.0
  %242 = vmatpush.msra.mxu0 %v31
  %243 = vmatpush.msra.mxu0 %v30
  %244 = vmatpush.msra.mxu0 %v29
  %245 = vmatpush.msra.mxu0 %v28
  %246 = vmatpush.msra.mxu0 %v27
  %247 = vmatpush.msra.mxu0 %v26
  %248 = vmatpush.msra.mxu0 %v25
  %249 = vmatpush.msra.mxu0 %v24
  %250 = vmatmul.f32.gmra.mxu0 %v232
  %v251 = vpop.f32.mrf.mxu0
  %v252 = vadd.f32 0.0, %v251
  %253 = vdwg.mxu0
  %v254 = vadd.f32 %v230, %v252
  %v255 = vtanh.pop %v254
  %s256 = scalar_lea.vmem [#allocation2], 16
  %v257 = vld [vmem:[%s256] sm:$0xff]
  %v259 = vsel %vm186, %v255, 0
  %261 = vmatpush.msra.mxu0 0.0
  %262 = vmatpush.msra.mxu0 0.0
  %263 = vmatpush.msra.mxu0 0.0
  %264 = vmatpush.msra.mxu0 0.0
  %265 = vmatpush.msra.mxu0 0.0
  %266 = vmatpush.msra.mxu0 0.0
  %267 = vmatpush.msra.mxu0 0.0
  %268 = vmatpush.msra.mxu0 0.0
  %269 = vmatpush.msra.mxu0 %v31
  %270 = vmatpush.msra.mxu0 %v30
  %271 = vmatpush.msra.mxu0 %v29
  %272 = vmatpush.msra.mxu0 %v28
  %273 = vmatpush.msra.mxu0 %v27
  %274 = vmatpush.msra.mxu0 %v26
  %275 = vmatpush.msra.mxu0 %v25
  %276 = vmatpush.msra.mxu0 %v24
  %277 = vmatmul.f32.gmra.mxu0 %v259
  %v278 = vpop.f32.mrf.mxu0
  %v279 = vadd.f32 0.0, %v278
  %280 = vdwg.mxu0
  %v281 = vadd.f32 %v257, %v279
  %v282 = vtanh.pop %v281
  %s283 = scalar_lea.vmem [#allocation2], 24
  %v284 = vld [vmem:[%s283] sm:$0xff]
  %v286 = vsel %vm186, %v282, 0
  %288 = vmatpush.msra.mxu0 0.0
  %289 = vmatpush.msra.mxu0 0.0
  %290 = vmatpush.msra.mxu0 0.0
  %291 = vmatpush.msra.mxu0 0.0
  %292 = vmatpush.msra.mxu0 0.0
  %293 = vmatpush.msra.mxu0 0.0
  %294 = vmatpush.msra.mxu0 0.0
  %295 = vmatpush.msra.mxu0 0.0
  %296 = vmatpush.msra.mxu0 %v31
  %297 = vmatpush.msra.mxu0 %v30
  %298 = vmatpush.msra.mxu0 %v29
  %299 = vmatpush.msra.mxu0 %v28
  %300 = vmatpush.msra.mxu0 %v27
  %301 = vmatpush.msra.mxu0 %v26
  %302 = vmatpush.msra.mxu0 %v25
  %303 = vmatpush.msra.mxu0 %v24
  %304 = vmatmul.f32.gmra.mxu0 %v286
  %v305 = vpop.f32.mrf.mxu0
  %v306 = vadd.f32 0.0, %v305
  %307 = vdwg.mxu0
  %v308 = vadd.f32 %v284, %v306
  %v309 = vtanh.pop %v308
  %s310 = scalar_lea.vmem [#allocation2], 32
  %v311 = vld [vmem:[%s310] sm:$0xff]
  %v313 = vsel %vm186, %v309, 0
  %315 = vmatpush.msra.mxu0 0.0
  %316 = vmatpush.msra.mxu0 0.0
  %317 = vmatpush.msra.mxu0 0.0
  %318 = vmatpush.msra.mxu0 0.0
  %319 = vmatpush.msra.mxu0 0.0
  %320 = vmatpush.msra.mxu0 0.0
  %321 = vmatpush.msra.mxu0 0.0
  %322 = vmatpush.msra.mxu0 0.0
  %323 = vmatpush.msra.mxu0 %v31
  %324 = vmatpush.msra.mxu0 %v30
  %325 = vmatpush.msra.mxu0 %v29
  %326 = vmatpush.msra.mxu0 %v28
  %327 = vmatpush.msra.mxu0 %v27
  %328 = vmatpush.msra.mxu0 %v26
  %329 = vmatpush.msra.mxu0 %v25
  %330 = vmatpush.msra.mxu0 %v24
  %331 = vmatmul.f32.gmra.mxu0 %v313
  %v332 = vpop.f32.mrf.mxu0
  %v333 = vadd.f32 0.0, %v332
  %334 = vdwg.mxu0
  %v335 = vadd.f32 %v311, %v333
  %v336 = vtanh.pop %v335
  %s337 = scalar_lea.vmem [#allocation2], 40
  %v338 = vld [vmem:[%s337] sm:$0xff]
  %v340 = vsel %vm186, %v336, 0
  %342 = vmatpush.msra.mxu0 0.0
  %343 = vmatpush.msra.mxu0 0.0
  %344 = vmatpush.msra.mxu0 0.0
  %345 = vmatpush.msra.mxu0 0.0
  %346 = vmatpush.msra.mxu0 0.0
  %347 = vmatpush.msra.mxu0 0.0
  %348 = vmatpush.msra.mxu0 0.0
  %349 = vmatpush.msra.mxu0 0.0
  %350 = vmatpush.msra.mxu0 %v31
  %351 = vmatpush.msra.mxu0 %v30
  %352 = vmatpush.msra.mxu0 %v29
  %353 = vmatpush.msra.mxu0 %v28
  %354 = vmatpush.msra.mxu0 %v27
  %355 = vmatpush.msra.mxu0 %v26
  %356 = vmatpush.msra.mxu0 %v25
  %357 = vmatpush.msra.mxu0 %v24
  %358 = vmatmul.f32.gmra.mxu0 %v340
  %v359 = vpop.f32.mrf.mxu0
  %v360 = vadd.f32 0.0, %v359
  %361 = vdwg.mxu0
  %v362 = vadd.f32 %v338, %v360
  %v363 = vtanh.pop %v362
  %s364 = scalar_lea.vmem [#allocation2], 48
  %v365 = vld [vmem:[%s364] sm:$0xff]
  %v367 = vsel %vm186, %v363, 0
  %369 = vmatpush.msra.mxu0 0.0
  %370 = vmatpush.msra.mxu0 0.0
  %371 = vmatpush.msra.mxu0 0.0
  %372 = vmatpush.msra.mxu0 0.0
  %373 = vmatpush.msra.mxu0 0.0
  %374 = vmatpush.msra.mxu0 0.0
  %375 = vmatpush.msra.mxu0 0.0
  %376 = vmatpush.msra.mxu0 0.0
  %377 = vmatpush.msra.mxu0 %v31
  %378 = vmatpush.msra.mxu0 %v30
  %379 = vmatpush.msra.mxu0 %v29
  %380 = vmatpush.msra.mxu0 %v28
  %381 = vmatpush.msra.mxu0 %v27
  %382 = vmatpush.msra.mxu0 %v26
  %383 = vmatpush.msra.mxu0 %v25
  %384 = vmatpush.msra.mxu0 %v24
  %385 = vmatmul.f32.gmra.mxu0 %v367
  %v386 = vpop.f32.mrf.mxu0
  %v387 = vadd.f32 0.0, %v386
  %388 = vdwg.mxu0
  %v389 = vadd.f32 %v365, %v387
  %v390 = vtanh.pop %v389
  %s391 = scalar_lea.vmem [#allocation2], 56
  %v392 = vld [vmem:[%s391] sm:$0xff]
  %v394 = vsel %vm186, %v390, 0
  %396 = vmatpush.msra.mxu0 0.0
  %397 = vmatpush.msra.mxu0 0.0
  %398 = vmatpush.msra.mxu0 0.0
  %399 = vmatpush.msra.mxu0 0.0
  %400 = vmatpush.msra.mxu0 0.0
  %401 = vmatpush.msra.mxu0 0.0
  %402 = vmatpush.msra.mxu0 0.0
  %403 = vmatpush.msra.mxu0 0.0
  %404 = vmatpush.msra.mxu0 %v31
  %405 = vmatpush.msra.mxu0 %v30
  %406 = vmatpush.msra.mxu0 %v29
  %407 = vmatpush.msra.mxu0 %v28
  %408 = vmatpush.msra.mxu0 %v27
  %409 = vmatpush.msra.mxu0 %v26
  %410 = vmatpush.msra.mxu0 %v25
  %411 = vmatpush.msra.mxu0 %v24
  %412 = vmatmul.f32.gmra.mxu0 %v394
  %v413 = vpop.f32.mrf.mxu0
  %v414 = vadd.f32 0.0, %v413
  %415 = vdwg.mxu0
  %v416 = vadd.f32 %v392, %v414
  %v417 = vtanh.pop %v416
  %s418 = scalar_lea.vmem [#allocation2], 64
  %v419 = vld [vmem:[%s418] sm:$0xff]
  %v421 = vsel %vm186, %v417, 0
  %423 = vmatpush.msra.mxu0 0.0
  %424 = vmatpush.msra.mxu0 0.0
  %425 = vmatpush.msra.mxu0 0.0
  %426 = vmatpush.msra.mxu0 0.0
  %427 = vmatpush.msra.mxu0 0.0
  %428 = vmatpush.msra.mxu0 0.0
  %429 = vmatpush.msra.mxu0 0.0
  %430 = vmatpush.msra.mxu0 0.0
  %431 = vmatpush.msra.mxu0 %v31
  %432 = vmatpush.msra.mxu0 %v30
  %433 = vmatpush.msra.mxu0 %v29
  %434 = vmatpush.msra.mxu0 %v28
  %435 = vmatpush.msra.mxu0 %v27
  %436 = vmatpush.msra.mxu0 %v26
  %437 = vmatpush.msra.mxu0 %v25
  %438 = vmatpush.msra.mxu0 %v24
  %439 = vmatmul.f32.gmra.mxu0 %v421
  %v440 = vpop.f32.mrf.mxu0
  %v441 = vadd.f32 0.0, %v440
  %442 = vdwg.mxu0
  %v443 = vadd.f32 %v419, %v441
  %v444 = vtanh.pop %v443
  %s445 = scalar_lea.vmem [#allocation2], 72
  %v446 = vld [vmem:[%s445] sm:$0xff]
  %v448 = vsel %vm186, %v444, 0
  %450 = vmatpush.msra.mxu0 0.0
  %451 = vmatpush.msra.mxu0 0.0
  %452 = vmatpush.msra.mxu0 0.0
  %453 = vmatpush.msra.mxu0 0.0
  %454 = vmatpush.msra.mxu0 0.0
  %455 = vmatpush.msra.mxu0 0.0
  %456 = vmatpush.msra.mxu0 0.0
  %457 = vmatpush.msra.mxu0 0.0
  %458 = vmatpush.msra.mxu0 %v31
  %459 = vmatpush.msra.mxu0 %v30
  %460 = vmatpush.msra.mxu0 %v29
  %461 = vmatpush.msra.mxu0 %v28
  %462 = vmatpush.msra.mxu0 %v27
  %463 = vmatpush.msra.mxu0 %v26
  %464 = vmatpush.msra.mxu0 %v25
  %465 = vmatpush.msra.mxu0 %v24
  %466 = vmatmul.f32.gmra.mxu0 %v448
  %v467 = vpop.f32.mrf.mxu0
  %v468 = vadd.f32 0.0, %v467
  %469 = vdwg.mxu0
  %v470 = vadd.f32 %v446, %v468
  %v471 = vtanh.pop %v470
  %s472 = scalar_lea.vmem [#allocation2], 80
  %v473 = vld [vmem:[%s472] sm:$0xff]
  %v475 = vsel %vm186, %v471, 0
  %477 = vmatpush.msra.mxu0 0.0
  %478 = vmatpush.msra.mxu0 0.0
  %479 = vmatpush.msra.mxu0 0.0
  %480 = vmatpush.msra.mxu0 0.0
  %481 = vmatpush.msra.mxu0 0.0
  %482 = vmatpush.msra.mxu0 0.0
  %483 = vmatpush.msra.mxu0 0.0
  %484 = vmatpush.msra.mxu0 0.0
  %485 = vmatpush.msra.mxu0 %v31
  %486 = vmatpush.msra.mxu0 %v30
  %487 = vmatpush.msra.mxu0 %v29
  %488 = vmatpush.msra.mxu0 %v28
  %489 = vmatpush.msra.mxu0 %v27
  %490 = vmatpush.msra.mxu0 %v26
  %491 = vmatpush.msra.mxu0 %v25
  %492 = vmatpush.msra.mxu0 %v24
  %493 = vmatmul.f32.gmra.mxu0 %v475
  %v494 = vpop.f32.mrf.mxu0
  %v495 = vadd.f32 0.0, %v494
  %496 = vdwg.mxu0
  %v497 = vadd.f32 %v473, %v495
  %v498 = vtanh.pop %v497
  %s499 = scalar_lea.vmem [#allocation2], 88
  %v500 = vld [vmem:[%s499] sm:$0xff]
  %v502 = vsel %vm186, %v498, 0
  %504 = vmatpush.msra.mxu0 0.0
  %505 = vmatpush.msra.mxu0 0.0
  %506 = vmatpush.msra.mxu0 0.0
  %507 = vmatpush.msra.mxu0 0.0
  %508 = vmatpush.msra.mxu0 0.0
  %509 = vmatpush.msra.mxu0 0.0
  %510 = vmatpush.msra.mxu0 0.0
  %511 = vmatpush.msra.mxu0 0.0
  %512 = vmatpush.msra.mxu0 %v31
  %513 = vmatpush.msra.mxu0 %v30
  %514 = vmatpush.msra.mxu0 %v29
  %515 = vmatpush.msra.mxu0 %v28
  %516 = vmatpush.msra.mxu0 %v27
  %517 = vmatpush.msra.mxu0 %v26
  %518 = vmatpush.msra.mxu0 %v25
  %519 = vmatpush.msra.mxu0 %v24
  %520 = vmatmul.f32.gmra.mxu0 %v502
  %v521 = vpop.f32.mrf.mxu0
  %v522 = vadd.f32 0.0, %v521
  %523 = vdwg.mxu0
  %v524 = vadd.f32 %v500, %v522
  %v525 = vtanh.pop %v524
  %s526 = scalar_lea.vmem [#allocation2], 96
  %v527 = vld [vmem:[%s526] sm:$0xff]
  %v529 = vsel %vm186, %v525, 0
  %531 = vmatpush.msra.mxu0 0.0
  %532 = vmatpush.msra.mxu0 0.0
  %533 = vmatpush.msra.mxu0 0.0
  %534 = vmatpush.msra.mxu0 0.0
  %535 = vmatpush.msra.mxu0 0.0
  %536 = vmatpush.msra.mxu0 0.0
  %537 = vmatpush.msra.mxu0 0.0
  %538 = vmatpush.msra.mxu0 0.0
  %539 = vmatpush.msra.mxu0 %v31
  %540 = vmatpush.msra.mxu0 %v30
  %541 = vmatpush.msra.mxu0 %v29
  %542 = vmatpush.msra.mxu0 %v28
  %543 = vmatpush.msra.mxu0 %v27
  %544 = vmatpush.msra.mxu0 %v26
  %545 = vmatpush.msra.mxu0 %v25
  %546 = vmatpush.msra.mxu0 %v24
  %547 = vmatmul.f32.gmra.mxu0 %v529
  %v548 = vpop.f32.mrf.mxu0
  %v549 = vadd.f32 0.0, %v548
  %550 = vdwg.mxu0
  %v551 = vadd.f32 %v527, %v549
  %v552 = vtanh.pop %v551
  %s553 = scalar_lea.vmem [#allocation2], 104
  %v554 = vld [vmem:[%s553] sm:$0xff]
  %v556 = vsel %vm186, %v552, 0
  %558 = vmatpush.msra.mxu0 0.0
  %559 = vmatpush.msra.mxu0 0.0
  %560 = vmatpush.msra.mxu0 0.0
  %561 = vmatpush.msra.mxu0 0.0
  %562 = vmatpush.msra.mxu0 0.0
  %563 = vmatpush.msra.mxu0 0.0
  %564 = vmatpush.msra.mxu0 0.0
  %565 = vmatpush.msra.mxu0 0.0
  %566 = vmatpush.msra.mxu0 %v31
  %567 = vmatpush.msra.mxu0 %v30
  %568 = vmatpush.msra.mxu0 %v29
  %569 = vmatpush.msra.mxu0 %v28
  %570 = vmatpush.msra.mxu0 %v27
  %571 = vmatpush.msra.mxu0 %v26
  %572 = vmatpush.msra.mxu0 %v25
  %573 = vmatpush.msra.mxu0 %v24
  %574 = vmatmul.f32.gmra.mxu0 %v556
  %v575 = vpop.f32.mrf.mxu0
  %v576 = vadd.f32 0.0, %v575
  %577 = vdwg.mxu0
  %v578 = vadd.f32 %v554, %v576
  %v579 = vtanh.pop %v578
  %s580 = scalar_lea.vmem [#allocation2], 112
  %v581 = vld [vmem:[%s580] sm:$0xff]
  %v583 = vsel %vm186, %v579, 0
  %585 = vmatpush.msra.mxu0 0.0
  %586 = vmatpush.msra.mxu0 0.0
  %587 = vmatpush.msra.mxu0 0.0
  %588 = vmatpush.msra.mxu0 0.0
  %589 = vmatpush.msra.mxu0 0.0
  %590 = vmatpush.msra.mxu0 0.0
  %591 = vmatpush.msra.mxu0 0.0
  %592 = vmatpush.msra.mxu0 0.0
  %593 = vmatpush.msra.mxu0 %v31
  %594 = vmatpush.msra.mxu0 %v30
  %595 = vmatpush.msra.mxu0 %v29
  %596 = vmatpush.msra.mxu0 %v28
  %597 = vmatpush.msra.mxu0 %v27
  %598 = vmatpush.msra.mxu0 %v26
  %599 = vmatpush.msra.mxu0 %v25
  %600 = vmatpush.msra.mxu0 %v24
  %601 = vmatmul.f32.gmra.mxu0 %v583
  %v602 = vpop.f32.mrf.mxu0
  %v603 = vadd.f32 0.0, %v602
  %604 = vdwg.mxu0
  %v605 = vadd.f32 %v581, %v603
  %v606 = vtanh.pop %v605
  %s607 = scalar_lea.vmem [#allocation2], 120
  %v608 = vld [vmem:[%s607] sm:$0xff]
  %v610 = vsel %vm186, %v606, 0
  %612 = vmatpush.msra.mxu0 0.0
  %613 = vmatpush.msra.mxu0 0.0
  %614 = vmatpush.msra.mxu0 0.0
  %615 = vmatpush.msra.mxu0 0.0
  %616 = vmatpush.msra.mxu0 0.0
  %617 = vmatpush.msra.mxu0 0.0
  %618 = vmatpush.msra.mxu0 0.0
  %619 = vmatpush.msra.mxu0 0.0
  %620 = vmatpush.msra.mxu0 %v31
  %621 = vmatpush.msra.mxu0 %v30
  %622 = vmatpush.msra.mxu0 %v29
  %623 = vmatpush.msra.mxu0 %v28
  %624 = vmatpush.msra.mxu0 %v27
  %625 = vmatpush.msra.mxu0 %v26
  %626 = vmatpush.msra.mxu0 %v25
  %627 = vmatpush.msra.mxu0 %v24
  %628 = vmatmul.f32.gmra.mxu0 %v610
  %v629 = vpop.f32.mrf.mxu0
  %v630 = vadd.f32 0.0, %v629
  %631 = vdwg.mxu0
  %v632 = vadd.f32 %v608, %v630
  %v633 = vtanh.pop %v632
  %v634 = vld [vmem:[%s4] sm:$0x1]
  %v636 = vperm.slane %v634, 0
  %v638 = vmul.f32 %v633, %v636
  %v639 = vsel %vm186, %v638, 0.0
  %640 = vadd.xlane.f32.xlu0 %v639
  %v641 = vpop.xlane.xlu0 %640
  %s642 = sld [smem:[#allocation3]]
  %v643 = vstv %s642
  %v644 = vadd.f32 %v641, %v643
  %vm645 = vcmask 7168
  %646 = vst.msk [vmem:[%s6] sm:$0xff] %vm645, %v644
  // Predicated region
  $region26: #{rnn_net_forward.1} parent=0 // pred_check
    _
  $region27: #{rnn_net_forward.1} parent=0 // pred_check_branch
    %648 = sbr.rel (0) target = $region29
  $region28: #{rnn_net_forward.1} parent=0 // pred_region
    _
  $region29: #{rnn_net_forward.1} parent=0 // pred_fallthru
    _
  // Predicated region
  $region30: #{rnn_net_forward.1} parent=0 // pred_check
    _
  $region31: #{rnn_net_forward.1} parent=0 // pred_check_branch
    %650 = sbr.rel (0) target = $region33
  $region32: #{rnn_net_forward.1} parent=0 // pred_region
    _
  $region33: #{rnn_net_forward.1} parent=0 // pred_fallthru
    _

</llo_original>
